<compile_context>
chip_gen: v7x
topology: tpu7x:2x2x1
jax: 0.10.0
libtpu: 0.0.40
codegen_flags: <defaults>
</compile_context>

<pallas_src>
import math
import numpy as np
import jax
import jax.numpy as jnp
from jax.experimental import pallas as pl
from jax.experimental.pallas import tpu as pltpu

# ---- model config (matches the PyTorch module at small test shapes) ----
B = 2              # batch
S = 8              # seq_len
H = 32             # hidden_size
NQ = 4             # num_q_heads
NKV = 2            # num_kv_heads
D = H // NQ        # head_dim = 8
M = 64             # mlp_hidden_size
N_REP = NQ // NKV  # GQA repeat = 2
EPS = 1e-5
THETA = 10000.0

BS = B * S         # 16 rows processed at once
WIDE = 128         # lane width of the fused projection outputs
QW = NQ * D        # 32
KW = NKV * D       # 16

_INV_SQRT_H = 1.0 / math.sqrt(H)
_INV_SQRT_D = 1.0 / math.sqrt(D)
_NEG_BIG = -1e30


# --------------------------------------------------------------------------
# kernel
# --------------------------------------------------------------------------
def llama2_block_kernel(x_ref, mask_ref, cs_ref, g1_ref, g2_ref,
                        wqkv_ref, wo_ref, wgu_ref, wd_ref, o_ref):
    bf16 = jnp.bfloat16
    x = x_ref[...]                                            # (16,32) f32

    # --- RMSNorm1: x * (g / (||x|| / sqrt(H) + eps)), exact division ---
    ss1 = jnp.sum(x * x, axis=-1, keepdims=True)              # (16,1)
    h1 = x * (g1_ref[...] / (jnp.sqrt(ss1) * _INV_SQRT_H + EPS))

    # --- fused [q | k | v | q@R | k@R] projection (one lane-dense matmul);
    #     RoPE = one full-width multiply by the cos/sin table + one 64-wide add,
    #     with 1/sqrt(D) pre-folded into the q part of the table. ---
    proj = jnp.dot(h1.astype(bf16), wqkv_ref[...],
                   preferred_element_type=jnp.float32)        # (16,128)
    pr = proj * cs_ref[...]
    qkv = pr[:, 0:64] + pr[:, 64:128]                         # (16,64) = [q_rope/sqrt(D) | k_rope | v]

    # --- stack heads along sublanes: Q (64,8) [h0|h1|h2|h3 rows], K/V (32,8) ---
    q_all = jnp.concatenate([qkv[:, h * D:(h + 1) * D] for h in range(NQ)], axis=0)
    k_all = jnp.concatenate([qkv[:, QW + g * D:QW + (g + 1) * D]
                             for g in range(NKV)], axis=0)
    v_all = jnp.concatenate([qkv[:, QW + KW + g * D:QW + KW + (g + 1) * D]
                             for g in range(NKV)], axis=0)

    # --- one score matmul + one softmax + one PV matmul for ALL heads (bf16-in,
    #     f32-acc); the precomputed additive mask enforces GQA-group and
    #     per-batch block structure. ---
    s = jax.lax.dot_general(q_all.astype(bf16), k_all.astype(bf16),
                            (((1,), (1,)), ((), ())),
                            preferred_element_type=jnp.float32)          # (64,32)
    s = s + mask_ref[...]
    m = jnp.max(s, axis=-1, keepdims=True)
    p = jnp.exp(s - m)
    p = p * pl.reciprocal(jnp.sum(p, axis=-1, keepdims=True), approx=True)
    o_all = jnp.dot(p.astype(bf16), v_all.astype(bf16),
                    preferred_element_type=jnp.float32)                   # (64,8)

    # --- repack head outputs into lanes and do ONE fused o_proj matmul ---
    o_slab = jnp.concatenate([o_all[h * BS:(h + 1) * BS, :]
                              for h in range(NQ)], axis=1)                # (16,32)
    r1 = x + jnp.dot(o_slab.astype(bf16), wo_ref[...],
                     preferred_element_type=jnp.float32)                  # (16,32)

    # --- RMSNorm2 + SwiGLU MLP (gate|up fused into one 128-wide matmul) ---
    ss2 = jnp.sum(r1 * r1, axis=-1, keepdims=True)
    h2 = r1 * (g2_ref[...] / (jnp.sqrt(ss2) * _INV_SQRT_H + EPS))
    gu = jnp.dot(h2.astype(bf16), wgu_ref[...],
                 preferred_element_type=jnp.float32)                      # (16,128)
    gate = gu[:, 0:M]
    up = gu[:, M:2 * M]
    sig = 0.5 * (jnp.tanh(0.5 * gate) + 1.0)       # exact sigmoid, single EUP op
    h3 = gate * sig * up                                                   # (16,64)
    mlp = jnp.dot(h3.astype(bf16), wd_ref[...],
                  preferred_element_type=jnp.float32)                      # (16,32)

    o_ref[...] = (r1 + mlp).astype(o_ref.dtype)


# --------------------------------------------------------------------------
# parameter packing (pure setup, done once): fuse weights, fold RoPE rotation,
# build the cos/sin table and the static attention mask.
# --------------------------------------------------------------------------
def pack_params(cosb, sinb, g1, g2, wq, wk, wv, wo, wg, wu, wd):
    cosb = np.asarray(cosb, np.float32)            # (S, D), halves duplicated
    sinb = np.asarray(sinb, np.float32)
    wq = np.asarray(wq, np.float32); wk = np.asarray(wk, np.float32)
    wv = np.asarray(wv, np.float32); wo = np.asarray(wo, np.float32)
    wg = np.asarray(wg, np.float32); wu = np.asarray(wu, np.float32)
    wd = np.asarray(wd, np.float32)

    # rotate_half as a per-head signed permutation: rot(t) = t @ R
    half = D // 2
    R = np.zeros((D, D), np.float32)
    R[np.arange(half) + half, np.arange(half)] = -1.0
    R[np.arange(half), np.arange(half) + half] = 1.0

    def rot_w(w, nh):
        w3 = w.reshape(H, nh, D)
        return np.einsum('ihd,de->ihe', w3, R).reshape(H, nh * D)

    # fused projection weight: cols [q | k | v | q@R | k@R | 0]   -> (32, 128)
    w_qkv = np.zeros((H, WIDE), np.float32)
    w_qkv[:, 0:QW] = wq
    w_qkv[:, QW:QW + KW] = wk
    w_qkv[:, QW + KW:QW + 2 * KW] = wv
    w_qkv[:, 64:64 + QW] = rot_w(wq, NQ)
    w_qkv[:, 64 + QW:64 + QW + KW] = rot_w(wk, NKV)

    # cos/sin table in the head-concatenated lane layout; 1/sqrt(D) folded into
    # the q columns so attention needs no extra scale.
    cq = np.tile(cosb, (1, NQ)) * _INV_SQRT_D
    ck = np.tile(cosb, (1, NKV))
    sq = np.tile(sinb, (1, NQ)) * _INV_SQRT_D
    sk = np.tile(sinb, (1, NKV))
    cs = np.concatenate([cq, ck, np.ones((S, KW), np.float32),
                         sq, sk, np.zeros((S, KW), np.float32)], axis=-1)   # (S,128)
    cs = np.tile(cs, (B, 1))                                                # (16,128)

    # static additive mask over the head-stacked score matrix (64 q-rows x 32 kv-cols):
    # row = h*BS + b*S + s, col = g*BS + b'*S + s'; valid iff g == h//N_REP and b == b'.
    mask = np.full((NQ * BS, NKV * BS), _NEG_BIG, np.float32)
    for h in range(NQ):
        g = h // N_REP
        for b in range(B):
            mask[h * BS + b * S: h * BS + (b + 1) * S,
                 g * BS + b * S: g * BS + (b + 1) * S] = 0.0

    # fused gate|up  -> (32, 128);  down-projection (64, 32); o_proj (32, 32) as-is
    w_gu = np.zeros((H, 2 * M), np.float32)
    w_gu[:, 0:M] = wg
    w_gu[:, M:2 * M] = wu

    g1p = np.asarray(g1, np.float32).reshape(1, H)
    g2p = np.asarray(g2, np.float32).reshape(1, H)

    bf = jnp.bfloat16
    return dict(
        mask=jnp.asarray(mask, jnp.float32),
        cs=jnp.asarray(cs, jnp.float32),
        g1=jnp.asarray(g1p, jnp.float32),
        g2=jnp.asarray(g2p, jnp.float32),
        w_qkv=jnp.asarray(w_qkv, bf),
        wo=jnp.asarray(wo, bf),
        w_gu=jnp.asarray(w_gu, bf),
        wd=jnp.asarray(wd, bf),
    )


# --------------------------------------------------------------------------
# wrapper: single-step pallas_call, everything resident in VMEM; only free
# reshapes outside the kernel (no pad, no slice).
# --------------------------------------------------------------------------
@jax.jit
def llama2_block(x, params):
    x2 = x.reshape(BS, H)                                          # free reshape
    vmem = lambda: pl.BlockSpec(memory_space=pltpu.MemorySpace.VMEM)
    out = pl.pallas_call(
        llama2_block_kernel,
        out_shape=jax.ShapeDtypeStruct((BS, H), jnp.float32),
        in_specs=[vmem() for _ in range(9)],
        out_specs=vmem(),
    )(x2, params['mask'], params['cs'], params['g1'], params['g2'],
      params['w_qkv'], params['wo'], params['w_gu'], params['wd'])
    return out.reshape(B, S, H)


# --------------------------------------------------------------------------
# pure numpy reference (mirrors the PyTorch forward, f32, original weights)
# --------------------------------------------------------------------------
def reference(x, cosb, sinb, g1, g2, wq, wk, wv, wo, wg, wu, wd):
    x = np.asarray(x, np.float32)

    def rmsnorm(t, w):
        n = np.linalg.norm(t, axis=-1, keepdims=True)
        return t * (w / (n / math.sqrt(H) + EPS))

    def rope(t):  # (B, S, nH, D)
        c = cosb[None, :, None, :]
        s = sinb[None, :, None, :]
        t1, t2 = t[..., :D // 2], t[..., D // 2:]
        rot = np.concatenate([-t2, t1], axis=-1)
        return t * c + rot * s

    h1 = rmsnorm(x, g1)
    q = (h1 @ wq).reshape(B, S, NQ, D)
    k = (h1 @ wk).reshape(B, S, NKV, D)
    v = (h1 @ wv).reshape(B, S, NKV, D)
    q, k = rope(q), rope(k)
    k = np.repeat(k, N_REP, axis=2)
    v = np.repeat(v, N_REP, axis=2)
    qh = q.transpose(0, 2, 1, 3)
    kh = k.transpose(0, 2, 1, 3)
    vh = v.transpose(0, 2, 1, 3)
    sc = qh @ kh.transpose(0, 1, 3, 2) / math.sqrt(D)
    sc = sc - sc.max(-1, keepdims=True)
    p = np.exp(sc)
    p = p / p.sum(-1, keepdims=True)
    attn = (p @ vh).transpose(0, 2, 1, 3).reshape(B, S, H)
    r1 = x + attn @ wo
    h2 = rmsnorm(r1, g2)
    gate = h2 @ wg
    up = h2 @ wu
    act = gate * (1.0 / (1.0 + np.exp(-gate)))
    return r1 + (act * up) @ wd


if __name__ == "__main__":
    key = jax.random.PRNGKey(0)
    ks = jax.random.split(key, 12)

    x = jax.random.normal(ks[0], (B, S, H), jnp.float32)

    # RoPE tables (precompute_freqs_cis equivalent), halves already duplicated
    freqs = 1.0 / (THETA ** (np.arange(0, D, 2, dtype=np.float32) / D))
    t = np.arange(S, dtype=np.float32)
    ang = np.outer(t, freqs)                                    # (S, D//2)
    cosb = np.concatenate([np.cos(ang), np.cos(ang)], -1).astype(np.float32)
    sinb = np.concatenate([np.sin(ang), np.sin(ang)], -1).astype(np.float32)

    # parameters (deterministic); Linear weights stored pre-transposed (in, out)
    scale = 0.05
    g1 = 1.0 + 0.1 * jax.random.normal(ks[1], (H,), jnp.float32)
    g2 = 1.0 + 0.1 * jax.random.normal(ks[2], (H,), jnp.float32)
    wq = scale * jax.random.normal(ks[3], (H, NQ * D), jnp.float32)
    wk = scale * jax.random.normal(ks[4], (H, NKV * D), jnp.float32)
    wv = scale * jax.random.normal(ks[5], (H, NKV * D), jnp.float32)
    wo = scale * jax.random.normal(ks[6], (NQ * D, H), jnp.float32)
    wg = scale * jax.random.normal(ks[7], (H, M), jnp.float32)
    wu = scale * jax.random.normal(ks[8], (H, M), jnp.float32)
    wd = scale * jax.random.normal(ks[9], (M, H), jnp.float32)

    params = pack_params(cosb, sinb, g1, g2, wq, wk, wv, wo, wg, wu, wd)

    out = jax.block_until_ready(llama2_block(x, params))

    ref = reference(np.asarray(x), cosb, sinb,
                    np.asarray(g1), np.asarray(g2),
                    np.asarray(wq), np.asarray(wk), np.asarray(wv), np.asarray(wo),
                    np.asarray(wg), np.asarray(wu), np.asarray(wd))
    np.testing.assert_allclose(np.asarray(out), ref, rtol=1e-2, atol=1e-2)

    print("KERNEL_OK")
</pallas_src>

<mosaic_0001>
module attributes {stable_mosaic.version = 11 : i64} {
  func.func @llama2_block_kernel(%arg0: memref<16x32xf32, #tpu.memory_space<vmem>>, %arg1: memref<64x32xf32, #tpu.memory_space<vmem>>, %arg2: memref<16x128xf32, #tpu.memory_space<vmem>>, %arg3: memref<1x32xf32, #tpu.memory_space<vmem>>, %arg4: memref<1x32xf32, #tpu.memory_space<vmem>>, %arg5: memref<32x128xbf16, #tpu.memory_space<vmem>>, %arg6: memref<32x32xbf16, #tpu.memory_space<vmem>>, %arg7: memref<32x128xbf16, #tpu.memory_space<vmem>>, %arg8: memref<64x32xbf16, #tpu.memory_space<vmem>>, %arg9: memref<16x32xf32, #tpu.memory_space<vmem>>) attributes {dimension_semantics = [], scalar_prefetch = 0 : i64, scratch_operands = 0 : i64, tpu.core_type = #tpu.core_type<tc>} {
    %c0 = arith.constant 0 : index
    %c0_0 = arith.constant 0 : index
    %0 = vector.load %arg0[%c0, %c0_0] : memref<16x32xf32, #tpu.memory_space<vmem>>, vector<16x32xf32>
    %1 = arith.mulf %0, %0 : vector<16x32xf32>
    %cst = arith.constant dense<0.000000e+00> : vector<16xf32>
    %2 = vector.multi_reduction <add>, %1, %cst [1] : vector<16x32xf32> to vector<16xf32>
    %3 = vector.shape_cast %2 : vector<16xf32> to vector<16x1xf32>
    %c0_1 = arith.constant 0 : index
    %c0_2 = arith.constant 0 : index
    %4 = vector.load %arg3[%c0_1, %c0_2] : memref<1x32xf32, #tpu.memory_space<vmem>>, vector<1x32xf32>
    %5 = math.sqrt %3 : vector<16x1xf32>
    %cst_3 = arith.constant 0.176776692 : f32
    %6 = vector.broadcast %cst_3 : f32 to vector<16x1xf32>
    %7 = arith.mulf %5, %6 : vector<16x1xf32>
    %cst_4 = arith.constant 9.99999974E-6 : f32
    %8 = vector.broadcast %cst_4 : f32 to vector<16x1xf32>
    %9 = arith.addf %7, %8 : vector<16x1xf32>
    %10 = vector.broadcast %4 : vector<1x32xf32> to vector<16x32xf32>
    %11 = vector.broadcast %9 : vector<16x1xf32> to vector<16x32xf32>
    %12 = arith.divf %10, %11 : vector<16x32xf32>
    %13 = arith.mulf %0, %12 : vector<16x32xf32>
    %14 = arith.truncf %13 : vector<16x32xf32> to vector<16x32xbf16>
    %c0_5 = arith.constant 0 : index
    %c0_6 = arith.constant 0 : index
    %15 = vector.load %arg5[%c0_5, %c0_6] : memref<32x128xbf16, #tpu.memory_space<vmem>>, vector<32x128xbf16>
    %cst_7 = arith.constant dense<0.000000e+00> : vector<16x128xf32>
    %16 = tpu.matmul %14, %15, %cst_7 {dimension_numbers = #tpu.dot_dimension_numbers<[1], [0], [0], [1], [0, 0, 1, 1], [], []>} : vector<16x32xbf16>, vector<32x128xbf16>, vector<16x128xf32> -> vector<16x128xf32>
    %c0_8 = arith.constant 0 : index
    %c0_9 = arith.constant 0 : index
    %17 = vector.load %arg2[%c0_8, %c0_9] : memref<16x128xf32, #tpu.memory_space<vmem>>, vector<16x128xf32>
    %18 = arith.mulf %16, %17 : vector<16x128xf32>
    %19 = vector.extract_strided_slice %18 {offsets = [0, 0], sizes = [16, 64], strides = [1, 1]} : vector<16x128xf32> to vector<16x64xf32>
    %20 = vector.extract_strided_slice %18 {offsets = [0, 64], sizes = [16, 64], strides = [1, 1]} : vector<16x128xf32> to vector<16x64xf32>
    %21 = arith.addf %19, %20 : vector<16x64xf32>
    %22 = vector.extract_strided_slice %21 {offsets = [0, 0], sizes = [16, 8], strides = [1, 1]} : vector<16x64xf32> to vector<16x8xf32>
    %23 = vector.extract_strided_slice %21 {offsets = [0, 8], sizes = [16, 8], strides = [1, 1]} : vector<16x64xf32> to vector<16x8xf32>
    %24 = vector.extract_strided_slice %21 {offsets = [0, 16], sizes = [16, 8], strides = [1, 1]} : vector<16x64xf32> to vector<16x8xf32>
    %25 = vector.extract_strided_slice %21 {offsets = [0, 24], sizes = [16, 8], strides = [1, 1]} : vector<16x64xf32> to vector<16x8xf32>
    %26 = tpu.concatenate %22, %23, %24, %25 in 0 : vector<16x8xf32>, vector<16x8xf32>, vector<16x8xf32>, vector<16x8xf32> -> vector<64x8xf32>
    %27 = vector.extract_strided_slice %21 {offsets = [0, 32], sizes = [16, 8], strides = [1, 1]} : vector<16x64xf32> to vector<16x8xf32>
    %28 = vector.extract_strided_slice %21 {offsets = [0, 40], sizes = [16, 8], strides = [1, 1]} : vector<16x64xf32> to vector<16x8xf32>
    %29 = tpu.concatenate %27, %28 in 0 : vector<16x8xf32>, vector<16x8xf32> -> vector<32x8xf32>
    %30 = vector.extract_strided_slice %21 {offsets = [0, 48], sizes = [16, 8], strides = [1, 1]} : vector<16x64xf32> to vector<16x8xf32>
    %31 = vector.extract_strided_slice %21 {offsets = [0, 56], sizes = [16, 8], strides = [1, 1]} : vector<16x64xf32> to vector<16x8xf32>
    %32 = tpu.concatenate %30, %31 in 0 : vector<16x8xf32>, vector<16x8xf32> -> vector<32x8xf32>
    %33 = arith.truncf %26 : vector<64x8xf32> to vector<64x8xbf16>
    %34 = arith.truncf %29 : vector<32x8xf32> to vector<32x8xbf16>
    %cst_10 = arith.constant dense<0.000000e+00> : vector<64x32xf32>
    %35 = tpu.matmul %33, %34, %cst_10 {dimension_numbers = #tpu.dot_dimension_numbers<[1], [1], [0], [0], [0, 0, 1, 0], [], []>} : vector<64x8xbf16>, vector<32x8xbf16>, vector<64x32xf32> -> vector<64x32xf32>
    %c0_11 = arith.constant 0 : index
    %c0_12 = arith.constant 0 : index
    %36 = vector.load %arg1[%c0_11, %c0_12] : memref<64x32xf32, #tpu.memory_space<vmem>>, vector<64x32xf32>
    %37 = arith.addf %35, %36 : vector<64x32xf32>
    %cst_13 = arith.constant dense<0xFF800000> : vector<64xf32>
    %38 = vector.multi_reduction <maximumf>, %37, %cst_13 [1] : vector<64x32xf32> to vector<64xf32>
    %39 = vector.shape_cast %38 : vector<64xf32> to vector<64x1xf32>
    %40 = vector.broadcast %39 : vector<64x1xf32> to vector<64x32xf32>
    %41 = arith.subf %37, %40 : vector<64x32xf32>
    %42 = math.exp %41 : vector<64x32xf32>
    %cst_14 = arith.constant dense<0.000000e+00> : vector<64xf32>
    %43 = vector.multi_reduction <add>, %42, %cst_14 [1] : vector<64x32xf32> to vector<64xf32>
    %44 = vector.shape_cast %43 : vector<64xf32> to vector<64x1xf32>
    %45 = tpu.reciprocal %44 {approx = true} : vector<64x1xf32> -> vector<64x1xf32>
    %46 = vector.broadcast %45 : vector<64x1xf32> to vector<64x32xf32>
    %47 = arith.mulf %42, %46 : vector<64x32xf32>
    %48 = arith.truncf %47 : vector<64x32xf32> to vector<64x32xbf16>
    %49 = arith.truncf %32 : vector<32x8xf32> to vector<32x8xbf16>
    %cst_15 = arith.constant dense<0.000000e+00> : vector<64x8xf32>
    %50 = tpu.matmul %48, %49, %cst_15 {dimension_numbers = #tpu.dot_dimension_numbers<[1], [0], [0], [1], [0, 0, 1, 1], [], []>} : vector<64x32xbf16>, vector<32x8xbf16>, vector<64x8xf32> -> vector<64x8xf32>
    %51 = vector.extract_strided_slice %50 {offsets = [0, 0], sizes = [16, 8], strides = [1, 1]} : vector<64x8xf32> to vector<16x8xf32>
    %52 = vector.extract_strided_slice %50 {offsets = [16, 0], sizes = [16, 8], strides = [1, 1]} : vector<64x8xf32> to vector<16x8xf32>
    %53 = vector.extract_strided_slice %50 {offsets = [32, 0], sizes = [16, 8], strides = [1, 1]} : vector<64x8xf32> to vector<16x8xf32>
    %54 = vector.extract_strided_slice %50 {offsets = [48, 0], sizes = [16, 8], strides = [1, 1]} : vector<64x8xf32> to vector<16x8xf32>
    %55 = tpu.concatenate %51, %52, %53, %54 in 1 : vector<16x8xf32>, vector<16x8xf32>, vector<16x8xf32>, vector<16x8xf32> -> vector<16x32xf32>
    %56 = arith.truncf %55 : vector<16x32xf32> to vector<16x32xbf16>
    %c0_16 = arith.constant 0 : index
    %c0_17 = arith.constant 0 : index
    %57 = vector.load %arg6[%c0_16, %c0_17] : memref<32x32xbf16, #tpu.memory_space<vmem>>, vector<32x32xbf16>
    %cst_18 = arith.constant dense<0.000000e+00> : vector<16x32xf32>
    %58 = tpu.matmul %56, %57, %cst_18 {dimension_numbers = #tpu.dot_dimension_numbers<[1], [0], [0], [1], [0, 0, 1, 1], [], []>} : vector<16x32xbf16>, vector<32x32xbf16>, vector<16x32xf32> -> vector<16x32xf32>
    %59 = arith.addf %0, %58 : vector<16x32xf32>
    %60 = arith.mulf %59, %59 : vector<16x32xf32>
    %cst_19 = arith.constant dense<0.000000e+00> : vector<16xf32>
    %61 = vector.multi_reduction <add>, %60, %cst_19 [1] : vector<16x32xf32> to vector<16xf32>
    %62 = vector.shape_cast %61 : vector<16xf32> to vector<16x1xf32>
    %c0_20 = arith.constant 0 : index
    %c0_21 = arith.constant 0 : index
    %63 = vector.load %arg4[%c0_20, %c0_21] : memref<1x32xf32, #tpu.memory_space<vmem>>, vector<1x32xf32>
    %64 = math.sqrt %62 : vector<16x1xf32>
    %cst_22 = arith.constant 0.176776692 : f32
    %65 = vector.broadcast %cst_22 : f32 to vector<16x1xf32>
    %66 = arith.mulf %64, %65 : vector<16x1xf32>
    %cst_23 = arith.constant 9.99999974E-6 : f32
    %67 = vector.broadcast %cst_23 : f32 to vector<16x1xf32>
    %68 = arith.addf %66, %67 : vector<16x1xf32>
    %69 = vector.broadcast %63 : vector<1x32xf32> to vector<16x32xf32>
    %70 = vector.broadcast %68 : vector<16x1xf32> to vector<16x32xf32>
    %71 = arith.divf %69, %70 : vector<16x32xf32>
    %72 = arith.mulf %59, %71 : vector<16x32xf32>
    %73 = arith.truncf %72 : vector<16x32xf32> to vector<16x32xbf16>
    %c0_24 = arith.constant 0 : index
    %c0_25 = arith.constant 0 : index
    %74 = vector.load %arg7[%c0_24, %c0_25] : memref<32x128xbf16, #tpu.memory_space<vmem>>, vector<32x128xbf16>
    %cst_26 = arith.constant dense<0.000000e+00> : vector<16x128xf32>
    %75 = tpu.matmul %73, %74, %cst_26 {dimension_numbers = #tpu.dot_dimension_numbers<[1], [0], [0], [1], [0, 0, 1, 1], [], []>} : vector<16x32xbf16>, vector<32x128xbf16>, vector<16x128xf32> -> vector<16x128xf32>
    %76 = vector.extract_strided_slice %75 {offsets = [0, 0], sizes = [16, 64], strides = [1, 1]} : vector<16x128xf32> to vector<16x64xf32>
    %77 = vector.extract_strided_slice %75 {offsets = [0, 64], sizes = [16, 64], strides = [1, 1]} : vector<16x128xf32> to vector<16x64xf32>
    %cst_27 = arith.constant 5.000000e-01 : f32
    %78 = vector.broadcast %cst_27 : f32 to vector<16x64xf32>
    %79 = arith.mulf %78, %76 : vector<16x64xf32>
    %80 = math.tanh %79 : vector<16x64xf32>
    %cst_28 = arith.constant 1.000000e+00 : f32
    %81 = vector.broadcast %cst_28 : f32 to vector<16x64xf32>
    %82 = arith.addf %80, %81 : vector<16x64xf32>
    %cst_29 = arith.constant 5.000000e-01 : f32
    %83 = vector.broadcast %cst_29 : f32 to vector<16x64xf32>
    %84 = arith.mulf %83, %82 : vector<16x64xf32>
    %85 = arith.mulf %76, %84 : vector<16x64xf32>
    %86 = arith.mulf %85, %77 : vector<16x64xf32>
    %87 = arith.truncf %86 : vector<16x64xf32> to vector<16x64xbf16>
    %c0_30 = arith.constant 0 : index
    %c0_31 = arith.constant 0 : index
    %88 = vector.load %arg8[%c0_30, %c0_31] : memref<64x32xbf16, #tpu.memory_space<vmem>>, vector<64x32xbf16>
    %cst_32 = arith.constant dense<0.000000e+00> : vector<16x32xf32>
    %89 = tpu.matmul %87, %88, %cst_32 {dimension_numbers = #tpu.dot_dimension_numbers<[1], [0], [0], [1], [0, 0, 1, 1], [], []>} : vector<16x64xbf16>, vector<64x32xbf16>, vector<16x32xf32> -> vector<16x32xf32>
    %90 = arith.addf %59, %89 : vector<16x32xf32>
    %c0_33 = arith.constant 0 : index
    %c0_34 = arith.constant 0 : index
    %91 = vector.load %arg9[%c0_33, %c0_34] : memref<16x32xf32, #tpu.memory_space<vmem>>, vector<16x32xf32>
    tpu.vector_store %arg9[%c0_33, %c0_34], %90 {strides = array<i32>} : memref<16x32xf32, #tpu.memory_space<vmem>>, vector<16x32xf32>,
    return
  }
}

</mosaic_0001>

<llo_original>
// kernel: llama2_block.1
$region0: #{llama2_block.1}
  #allocation0 [shape = 'u32[]', space=smem, size = 0x4, offset = 0x4, fixed_abs, tag = 'smem constant byte address 0x4 - core index']
  #allocation1 [shape = 'u32[144,128]{1,0:T(1,128)}', space=vmem, size = 0x12000, scoped, tag = 'internal scratch']
  %s0 = inlined_call_operand.vmem [shape: f32[16,32], index: 0, kind: input, shape index: {}]
  %s1 = inlined_call_operand.vmem [shape: f32[64,32], index: 1, kind: input, shape index: {}]
  %s2 = inlined_call_operand.vmem [shape: f32[16,128], index: 2, kind: input, shape index: {}]
  %s3 = inlined_call_operand.vmem [shape: f32[1,32], index: 3, kind: input, shape index: {}]
  %s4 = inlined_call_operand.vmem [shape: f32[1,32], index: 4, kind: input, shape index: {}]
  %s5 = inlined_call_operand.vmem [shape: bf16[32,128], index: 5, kind: input, shape index: {}]
  %s6 = inlined_call_operand.vmem [shape: bf16[32,32], index: 6, kind: input, shape index: {}]
  %s7 = inlined_call_operand.vmem [shape: bf16[32,128], index: 7, kind: input, shape index: {}]
  %s8 = inlined_call_operand.vmem [shape: bf16[64,32], index: 8, kind: input, shape index: {}]
  %s9 = inlined_call_operand.hbm [shape: f32[16,32], index: 9, kind: output, shape index: {}]
  %s10 = sld [smem:[#allocation0]]
  $region46: #{llama2_block.1} parent=0
    _
  %s12 = ssub.s32 1, %s10
  %s13 = scalar_select 0, %s12, %s10
  $region1: #{llama2_block.1} parent=0
    #allocation2 [shape = 'u8[8192]{0}', space=vmem, size = 0x2000, scoped, tag = 'output window, operand 0, single buffered']
    #allocation3 [shape = 's32[1]{0}', space=sflag, size = 0x4, scoped, tag = 'scoped memory for llama2_block.1']
    %14 = vsyncpa [#allocation3], 0
    // Predicated region
    $region2: #{llama2_block.1} parent=1 // pred_check
      _
    $region3: #{llama2_block.1} parent=1 // pred_check_branch
      %16 = sbr.rel (0) target = $region5
    $region4: #{llama2_block.1} parent=1 // pred_region
      _
    $region5: #{llama2_block.1} parent=1 // pred_fallthru
      _
    // Predicated region
    $region6: #{llama2_block.1} parent=1 // pred_check
      _
    $region7: #{llama2_block.1} parent=1 // pred_check_branch
      %18 = sbr.rel (0) target = $region9
    $region8: #{llama2_block.1} parent=1 // pred_region
      _
    $region9: #{llama2_block.1} parent=1 // pred_fallthru
      _
    // Predicated region
    $region10: #{llama2_block.1} parent=1 // pred_check
      _
    $region11: #{llama2_block.1} parent=1 // pred_check_branch
      %20 = sbr.rel (0) target = $region13
    $region12: #{llama2_block.1} parent=1 // pred_region
      _
    $region13: #{llama2_block.1} parent=1 // pred_fallthru
      _
    // Predicated region
    $region14: #{llama2_block.1} parent=1 // pred_check
      _
    $region15: #{llama2_block.1} parent=1 // pred_check_branch
      %22 = sbr.rel (0) target = $region17
    $region16: #{llama2_block.1} parent=1 // pred_region
      _
    $region17: #{llama2_block.1} parent=1 // pred_fallthru
      _
    // Predicated region
    $region18: #{llama2_block.1} parent=1 // pred_check
      _
    $region19: #{llama2_block.1} parent=1 // pred_check_branch
      %24 = sbr.rel (0) target = $region21
    $region20: #{llama2_block.1} parent=1 // pred_region
      _
    $region21: #{llama2_block.1} parent=1 // pred_fallthru
      _
    // Predicated region
    $region22: #{llama2_block.1} parent=1 // pred_check
      _
    $region23: #{llama2_block.1} parent=1 // pred_check_branch
      %26 = sbr.rel (0) target = $region25
    $region24: #{llama2_block.1} parent=1 // pred_region
      _
    $region25: #{llama2_block.1} parent=1 // pred_fallthru
      _
    // Predicated region
    $region26: #{llama2_block.1} parent=1 // pred_check
      _
    $region27: #{llama2_block.1} parent=1 // pred_check_branch
      %28 = sbr.rel (0) target = $region29
    $region28: #{llama2_block.1} parent=1 // pred_region
      _
    $region29: #{llama2_block.1} parent=1 // pred_fallthru
      _
    // Predicated region
    $region30: #{llama2_block.1} parent=1 // pred_check
      _
    $region31: #{llama2_block.1} parent=1 // pred_check_branch
      %30 = sbr.rel (0) target = $region33
    $region32: #{llama2_block.1} parent=1 // pred_region
      _
    $region33: #{llama2_block.1} parent=1 // pred_fallthru
      _
    // Predicated region
    $region34: #{llama2_block.1} parent=1 // pred_check
      _
    $region35: #{llama2_block.1} parent=1 // pred_check_branch
      %32 = sbr.rel (0) target = $region37
    $region36: #{llama2_block.1} parent=1 // pred_region
      _
    $region37: #{llama2_block.1} parent=1 // pred_fallthru
      _
    %v34 = vld [vmem:[%s0] sm:$0xff]
    %v35 = vld [vmem:[%s0 + $0x8] sm:$0xff]
    %v36 = vmul.f32 %v34, %v34
    %v37 = vmul.f32 %v35, %v35
    %vm38 = vcmask 261120
    %v39 = vsel %vm38, %v36, 0.0
    %40 = vadd.xlane.f32.xlu0 %v39
    %v41 = vpop.xlane.xlu0 %40
    %v42 = vsel %vm38, %v37, 0.0
    %43 = vadd.xlane.f32.xlu0 %v42
    %v44 = vpop.xlane.xlu0 %43
    %v45 = vld [vmem:[%s3] sm:$0x1]
    %v46 = vrsqrt.pop %v41
    %v47 = vmul.f32 %v41, %v46
    %vm48 = vcmp.eq.f32.partialorder %v41, inf
    %v49 = vsel %vm48, %v41, %v47
    %vm50 = vcmp.eq.f32.partialorder %v41, 0.0
    %v51 = vand.u32 %v41, 2147483648
    %v52 = vsel %vm50, %v51, %v49
    %v53 = vrsqrt.pop %v44
    %v54 = vmul.f32 %v44, %v53
    %vm55 = vcmp.eq.f32.partialorder %v44, inf
    %v56 = vsel %vm55, %v44, %v54
    %vm57 = vcmp.eq.f32.partialorder %v44, 0.0
    %v58 = vand.u32 %v44, 2147483648
    %v59 = vsel %vm57, %v58, %v56
    %v60 = vmul.f32 %v52, 0.17677669
    %v61 = vmul.f32 %v59, 0.17677669
    %v62 = vadd.f32 %v60, 1e-05
    %v63 = vadd.f32 %v61, 1e-05
    %v65 = vlaneseq
    %v66 = vshrl.u32 %v65, 7
    %v67 = vsub.s32 0, %v66
    %v68 = vrot.slane %v45, %v67
    %v70 = vrcp.pop %v62
    %v71 = vmul.f32 %v68, %v70
    %v72 = vrcp.pop %v63
    %v73 = vmul.f32 %v68, %v72
    %v74 = vmul.f32 %v34, %v71
    %v75 = vmul.f32 %v35, %v73
    %v76 = vpack.c.bf16 %v75, %v74
    %v77 = vld [vmem:[%s5] sm:$0xf]
    %v78 = vld [vmem:[%s5 + $0x4] sm:$0xf]
    %v79 = vld [vmem:[%s5 + $0x8] sm:$0xf]
    %v80 = vld [vmem:[%s5 + $0xc] sm:$0xf]
    %v85 = vunpack.c.l.b16 %v77
    %v86 = vunpack.c.l.b16 %v78
    %v87 = vunpack.c.l.b16 %v79
    %v88 = vunpack.c.l.b16 %v80
    %v89 = vpack.c.b16 %v86, %v85
    %v90 = vpack.c.b16 %v88, %v87
    %v94 = vsel %vm38, %v76, 0
    %96 = vmatprep.subr.bf16.mxu0 0
    %97 = vmatpush1.bf16.msra.mxu0 %v89
    %98 = vmatprep.subr.bf16.mxu0 0
    %99 = vmatpush1.bf16.msra.mxu0 %v90
    %100 = vmatprep.subr.bf16.mxu0 0
    %101 = vmatpush1.bf16.msra.mxu0 0
    %102 = vmatprep.subr.bf16.mxu0 0
    %103 = vmatpush1.bf16.msra.mxu0 0
    %104 = vmatprep.subr.bf16.mxu0 0
    %105 = vmatpush1.bf16.msra.mxu0 0
    %106 = vmatprep.subr.bf16.mxu0 0
    %107 = vmatpush1.bf16.msra.mxu0 0
    %108 = vmatprep.subr.bf16.mxu0 0
    %109 = vmatpush1.bf16.msra.mxu0 0
    %110 = vmatprep.subr.bf16.mxu0 0
    %111 = vmatpush1.bf16.msra.mxu0 0
    %112 = vmatprep.subr.bf16.mxu0 0
    %113 = vmatpush1.bf16.msra.mxu0 0
    %114 = vmatprep.subr.bf16.mxu0 0
    %115 = vmatpush1.bf16.msra.mxu0 0
    %116 = vmatprep.subr.bf16.mxu0 0
    %117 = vmatpush1.bf16.msra.mxu0 0
    %118 = vmatprep.subr.bf16.mxu0 0
    %119 = vmatpush1.bf16.msra.mxu0 0
    %120 = vmatprep.subr.bf16.mxu0 0
    %121 = vmatpush1.bf16.msra.mxu0 0
    %122 = vmatprep.subr.bf16.mxu0 0
    %123 = vmatpush1.bf16.msra.mxu0 0
    %124 = vmatprep.subr.bf16.mxu0 0
    %125 = vmatpush1.bf16.msra.mxu0 0
    %126 = vmatprep.subr.bf16.mxu0 0
    %127 = vmatpush1.bf16.msra.mxu0 0
    %128 = vmatprep.mubr.bf16.mxu0 0
    %129 = vmatmul.mubr.bf16.gmra.mrb[0].mxu0 %v94
    %v130 = vpop.f32.mrb[0].mxu0
    %v131 = vadd.f32 0.0, %v130
    %v132 = vpop.f32.mrb[0].mxu0
    %v133 = vpop.f32.mrb[0].mxu0
    %v134 = vadd.f32 0.0, %v133
    %v135 = vpop.f32.mrb[0].mxu0
    %136 = vdwg.mxu0
    %v137 = vld [vmem:[%s2] sm:$0xff]
    %v138 = vld [vmem:[%s2 + $0x8] sm:$0xff]
    %v139 = vmul.f32 %v131, %v137
    %v140 = vmul.f32 %v134, %v138
    %143 = vrot.lane.b32.xlu0 %v139, 64
    %v144 = vpop.permute.xlu0 %143
    %145 = vrot.lane.b32.xlu0 %v140, 64
    %v146 = vpop.permute.xlu0 %145
    %v149 = vadd.f32 %v139, %v144
    %v150 = vadd.f32 %v140, %v146
    %153 = vrot.lane.b32.xlu0 %v149, 120
    %v154 = vpop.permute.xlu0 %153
    %155 = vrot.lane.b32.xlu0 %v150, 120
    %v156 = vpop.permute.xlu0 %155
    %159 = vrot.lane.b32.xlu0 %v149, 112
    %v160 = vpop.permute.xlu0 %159
    %161 = vrot.lane.b32.xlu0 %v150, 112
    %v162 = vpop.permute.xlu0 %161
    %165 = vrot.lane.b32.xlu0 %v149, 104
    %v166 = vpop.permute.xlu0 %165
    %167 = vrot.lane.b32.xlu0 %v150, 104
    %v168 = vpop.permute.xlu0 %167
    %v171 = vpack.c.bf16 %v150, %v149
    %v172 = vpack.c.bf16 %v156, %v154
    %v173 = vpack.c.bf16 %v162, %v160
    %v174 = vpack.c.bf16 %v168, %v166
    %v175 = vld [vmem:[%s1] sm:$0xff]
    %v176 = vld [vmem:[%s1 + $0x8] sm:$0xff]
    %v177 = vld [vmem:[%s1 + $0x10] sm:$0xff]
    %v178 = vld [vmem:[%s1 + $0x18] sm:$0xff]
    %v179 = vld [vmem:[%s1 + $0x20] sm:$0xff]
    %v180 = vld [vmem:[%s1 + $0x28] sm:$0xff]
    %v181 = vld [vmem:[%s1 + $0x30] sm:$0xff]
    %v182 = vld [vmem:[%s1 + $0x38] sm:$0xff]
    %185 = vrot.lane.b32.xlu0 %v171, 96
    %v186 = vpop.permute.xlu0 %185
    %187 = vrot.lane.b32.xlu0 %v172, 96
    %v188 = vpop.permute.xlu0 %187
    %vm189 = vcmask 64512
    %v191 = vsel %vm189, %v171, 0
    %v194 = vsel %vm189, %v172, 0
    %v197 = vsel %vm189, %v173, 0
    %v200 = vsel %vm189, %v174, 0
    %v203 = vsel %vm189, %v186, 0
    %v206 = vsel %vm189, %v188, 0
    %208 = vmatprep.subr.bf16.mxu0 0
    %209 = vmatpush1.bf16.xpose.msra.mxu0 %v203
    %210 = vmatprep.subr.bf16.mxu0 0
    %211 = vmatpush1.bf16.xpose.msra.mxu0 %v206
    %212 = vmatprep.subr.bf16.mxu0 0
    %213 = vmatpush1.bf16.xpose.msra.mxu0 0
    %214 = vmatprep.subr.bf16.mxu0 0
    %215 = vmatpush1.bf16.xpose.msra.mxu0 0
    %216 = vmatprep.subr.bf16.mxu0 0
    %217 = vmatpush1.bf16.xpose.msra.mxu0 0
    %218 = vmatprep.subr.bf16.mxu0 0
    %219 = vmatpush1.bf16.xpose.msra.mxu0 0
    %220 = vmatprep.subr.bf16.mxu0 0
    %221 = vmatpush1.bf16.xpose.msra.mxu0 0
    %222 = vmatprep.subr.bf16.mxu0 0
    %223 = vmatpush1.bf16.xpose.msra.mxu0 0
    %224 = vmatprep.subr.bf16.mxu0 0
    %225 = vmatpush1.bf16.xpose.msra.mxu0 0
    %226 = vmatprep.subr.bf16.mxu0 0
    %227 = vmatpush1.bf16.xpose.msra.mxu0 0
    %228 = vmatprep.subr.bf16.mxu0 0
    %229 = vmatpush1.bf16.xpose.msra.mxu0 0
    %230 = vmatprep.subr.bf16.mxu0 0
    %231 = vmatpush1.bf16.xpose.msra.mxu0 0
    %232 = vmatprep.subr.bf16.mxu0 0
    %233 = vmatpush1.bf16.xpose.msra.mxu0 0
    %234 = vmatprep.subr.bf16.mxu0 0
    %235 = vmatpush1.bf16.xpose.msra.mxu0 0
    %236 = vmatprep.subr.bf16.mxu0 0
    %237 = vmatpush1.bf16.xpose.msra.mxu0 0
    %238 = vmatprep.subr.bf16.mxu0 0
    %239 = vmatpush1.bf16.xpose.msra.mxu0 0
    %240 = vmatprep.mubr.bf16.mxu0 0
    %241 = vmatmul.mubr.bf16.gmra.mrb[0].mxu0 %v191
    %v242 = vpop.f32.mrb[0].mxu0
    %v243 = vadd.f32 %v175, %v242
    %v244 = vpop.f32.mrb[0].mxu0
    %v245 = vpop.f32.mrb[0].mxu0
    %v246 = vadd.f32 %v176, %v245
    %v247 = vpop.f32.mrb[0].mxu0
    %248 = vmatprep.mubr.bf16.mxu0 0
    %249 = vmatmul.mubr.bf16.gmra.mrb[0].mxu0 %v194
    %v250 = vpop.f32.mrb[0].mxu0
    %v251 = vadd.f32 %v177, %v250
    %v252 = vpop.f32.mrb[0].mxu0
    %v253 = vpop.f32.mrb[0].mxu0
    %v254 = vadd.f32 %v178, %v253
    %v255 = vpop.f32.mrb[0].mxu0
    %256 = vmatprep.mubr.bf16.mxu0 0
    %257 = vmatmul.mubr.bf16.gmra.mrb[0].mxu0 %v197
    %v258 = vpop.f32.mrb[0].mxu0
    %v259 = vadd.f32 %v179, %v258
    %v260 = vpop.f32.mrb[0].mxu0
    %v261 = vpop.f32.mrb[0].mxu0
    %v262 = vadd.f32 %v180, %v261
    %v263 = vpop.f32.mrb[0].mxu0
    %264 = vmatprep.mubr.bf16.mxu0 0
    %265 = vmatmul.mubr.bf16.gmra.mrb[0].mxu0 %v200
    %v266 = vpop.f32.mrb[0].mxu0
    %v267 = vadd.f32 %v181, %v266
    %v268 = vpop.f32.mrb[0].mxu0
    %v269 = vpop.f32.mrb[0].mxu0
    %v270 = vadd.f32 %v182, %v269
    %v271 = vpop.f32.mrb[0].mxu0
    %272 = vdwg.mxu0
    %v273 = vsel %vm38, %v243, -inf
    %274 = vmax.xlane.f32.xlu0 %v273
    %v275 = vpop.xlane.xlu0 %274
    %v276 = vsel %vm38, %v246, -inf
    %277 = vmax.xlane.f32.xlu0 %v276
    %v278 = vpop.xlane.xlu0 %277
    %v279 = vsel %vm38, %v251, -inf
    %280 = vmax.xlane.f32.xlu0 %v279
    %v281 = vpop.xlane.xlu0 %280
    %v282 = vsel %vm38, %v254, -inf
    %283 = vmax.xlane.f32.xlu0 %v282
    %v284 = vpop.xlane.xlu0 %283
    %v285 = vsel %vm38, %v259, -inf
    %286 = vmax.xlane.f32.xlu0 %v285
    %v287 = vpop.xlane.xlu0 %286
    %v288 = vsel %vm38, %v262, -inf
    %289 = vmax.xlane.f32.xlu0 %v288
    %v290 = vpop.xlane.xlu0 %289
    %v291 = vsel %vm38, %v267, -inf
    %292 = vmax.xlane.f32.xlu0 %v291
    %v293 = vpop.xlane.xlu0 %292
    %v294 = vsel %vm38, %v270, -inf
    %295 = vmax.xlane.f32.xlu0 %v294
    %v296 = vpop.xlane.xlu0 %295
    %v297 = vsub.f32 %v243, %v275
    %v298 = vsub.f32 %v246, %v278
    %v299 = vsub.f32 %v251, %v281
    %v300 = vsub.f32 %v254, %v284
    %v301 = vsub.f32 %v259, %v287
    %v302 = vsub.f32 %v262, %v290
    %v303 = vsub.f32 %v267, %v293
    %v304 = vsub.f32 %v270, %v296
    %v305 = vmul.f32 %v297, 1.442695
    %v306 = vpow.pop %v305
    %v307 = vmul.f32 %v298, 1.442695
    %v308 = vpow.pop %v307
    %v309 = vmul.f32 %v299, 1.442695
    %v310 = vpow.pop %v309
    %v311 = vmul.f32 %v300, 1.442695
    %v312 = vpow.pop %v311
    %v313 = vmul.f32 %v301, 1.442695
    %v314 = vpow.pop %v313
    %v315 = vmul.f32 %v302, 1.442695
    %v316 = vpow.pop %v315
    %v317 = vmul.f32 %v303, 1.442695
    %v318 = vpow.pop %v317
    %v319 = vmul.f32 %v304, 1.442695
    %v320 = vpow.pop %v319
    %v321 = vsel %vm38, %v306, 0.0
    %322 = vadd.xlane.f32.xlu0 %v321
    %v323 = vpop.xlane.xlu0 %322
    %v324 = vsel %vm38, %v308, 0.0
    %325 = vadd.xlane.f32.xlu0 %v324
    %v326 = vpop.xlane.xlu0 %325
    %v327 = vsel %vm38, %v310, 0.0
    %328 = vadd.xlane.f32.xlu0 %v327
    %v329 = vpop.xlane.xlu0 %328
    %v330 = vsel %vm38, %v312, 0.0
    %331 = vadd.xlane.f32.xlu0 %v330
    %v332 = vpop.xlane.xlu0 %331
    %v333 = vsel %vm38, %v314, 0.0
    %334 = vadd.xlane.f32.xlu0 %v333
    %v335 = vpop.xlane.xlu0 %334
    %v336 = vsel %vm38, %v316, 0.0
    %337 = vadd.xlane.f32.xlu0 %v336
    %v338 = vpop.xlane.xlu0 %337
    %v339 = vsel %vm38, %v318, 0.0
    %340 = vadd.xlane.f32.xlu0 %v339
    %v341 = vpop.xlane.xlu0 %340
    %v342 = vsel %vm38, %v320, 0.0
    %343 = vadd.xlane.f32.xlu0 %v342
    %v344 = vpop.xlane.xlu0 %343
    %v345 = vrcp.pop %v323
    %v346 = vrcp.pop %v326
    %v347 = vrcp.pop %v329
    %v348 = vrcp.pop %v332
    %v349 = vrcp.pop %v335
    %v350 = vrcp.pop %v338
    %v351 = vrcp.pop %v341
    %v352 = vrcp.pop %v344
    %v353 = vmul.f32 %v306, %v345
    %v354 = vmul.f32 %v308, %v346
    %v355 = vmul.f32 %v310, %v347
    %v356 = vmul.f32 %v312, %v348
    %v357 = vmul.f32 %v314, %v349
    %v358 = vmul.f32 %v316, %v350
    %v359 = vmul.f32 %v318, %v351
    %v360 = vmul.f32 %v320, %v352
    %v361 = vpack.c.bf16 %v354, %v353
    %v362 = vpack.c.bf16 %v356, %v355
    %v363 = vpack.c.bf16 %v358, %v357
    %v364 = vpack.c.bf16 %v360, %v359
    %365 = vrot.lane.b32.xlu0 %v171, 80
    %v366 = vpop.permute.xlu0 %365
    %367 = vrot.lane.b32.xlu0 %v172, 80
    %v368 = vpop.permute.xlu0 %367
    %v372 = vsel %vm38, %v361, 0
    %v375 = vsel %vm38, %v362, 0
    %v378 = vsel %vm38, %v363, 0
    %v381 = vsel %vm38, %v364, 0
    %383 = vmatprep.subr.bf16.mxu0 0
    %384 = vmatpush1.bf16.msra.mxu0 %v366
    %385 = vmatprep.subr.bf16.mxu0 0
    %386 = vmatpush1.bf16.msra.mxu0 %v368
    %387 = vmatprep.subr.bf16.mxu0 0
    %388 = vmatpush1.bf16.msra.mxu0 0
    %389 = vmatprep.subr.bf16.mxu0 0
    %390 = vmatpush1.bf16.msra.mxu0 0
    %391 = vmatprep.subr.bf16.mxu0 0
    %392 = vmatpush1.bf16.msra.mxu0 0
    %393 = vmatprep.subr.bf16.mxu0 0
    %394 = vmatpush1.bf16.msra.mxu0 0
    %395 = vmatprep.subr.bf16.mxu0 0
    %396 = vmatpush1.bf16.msra.mxu0 0
    %397 = vmatprep.subr.bf16.mxu0 0
    %398 = vmatpush1.bf16.msra.mxu0 0
    %399 = vmatprep.subr.bf16.mxu0 0
    %400 = vmatpush1.bf16.msra.mxu0 0
    %401 = vmatprep.subr.bf16.mxu0 0
    %402 = vmatpush1.bf16.msra.mxu0 0
    %403 = vmatprep.subr.bf16.mxu0 0
    %404 = vmatpush1.bf16.msra.mxu0 0
    %405 = vmatprep.subr.bf16.mxu0 0
    %406 = vmatpush1.bf16.msra.mxu0 0
    %407 = vmatprep.subr.bf16.mxu0 0
    %408 = vmatpush1.bf16.msra.mxu0 0
    %409 = vmatprep.subr.bf16.mxu0 0
    %410 = vmatpush1.bf16.msra.mxu0 0
    %411 = vmatprep.subr.bf16.mxu0 0
    %412 = vmatpush1.bf16.msra.mxu0 0
    %413 = vmatprep.subr.bf16.mxu0 0
    %414 = vmatpush1.bf16.msra.mxu0 0
    %415 = vmatprep.mubr.bf16.mxu0 0
    %416 = vmatmul.mubr.bf16.gmra.mrb[0].mxu0 %v372
    %v417 = vpop.f32.mrb[0].mxu0
    %v418 = vadd.f32 0.0, %v417
    %v419 = vpop.f32.mrb[0].mxu0
    %v420 = vpop.f32.mrb[0].mxu0
    %v421 = vadd.f32 0.0, %v420
    %v422 = vpop.f32.mrb[0].mxu0
    %423 = vmatprep.mubr.bf16.mxu0 0
    %424 = vmatmul.mubr.bf16.gmra.mrb[0].mxu0 %v375
    %v425 = vpop.f32.mrb[0].mxu0
    %v426 = vadd.f32 0.0, %v425
    %v427 = vpop.f32.mrb[0].mxu0
    %v428 = vpop.f32.mrb[0].mxu0
    %v429 = vadd.f32 0.0, %v428
    %v430 = vpop.f32.mrb[0].mxu0
    %431 = vmatprep.mubr.bf16.mxu0 0
    %432 = vmatmul.mubr.bf16.gmra.mrb[0].mxu0 %v378
    %v433 = vpop.f32.mrb[0].mxu0
    %v434 = vadd.f32 0.0, %v433
    %v435 = vpop.f32.mrb[0].mxu0
    %v436 = vpop.f32.mrb[0].mxu0
    %v437 = vadd.f32 0.0, %v436
    %v438 = vpop.f32.mrb[0].mxu0
    %439 = vmatprep.mubr.bf16.mxu0 0
    %440 = vmatmul.mubr.bf16.gmra.mrb[0].mxu0 %v381
    %v441 = vpop.f32.mrb[0].mxu0
    %v442 = vadd.f32 0.0, %v441
    %v443 = vpop.f32.mrb[0].mxu0
    %v444 = vpop.f32.mrb[0].mxu0
    %v445 = vadd.f32 0.0, %v444
    %v446 = vpop.f32.mrb[0].mxu0
    %447 = vdwg.mxu0
    %450 = vrot.lane.b32.xlu0 %v426, 8
    %v451 = vpop.permute.xlu0 %450
    %452 = vrot.lane.b32.xlu0 %v429, 8
    %v453 = vpop.permute.xlu0 %452
    %458 = vrot.lane.b32.xlu0 %v434, 16
    %v459 = vpop.permute.xlu0 %458
    %460 = vrot.lane.b32.xlu0 %v437, 16
    %v461 = vpop.permute.xlu0 %460
    %466 = vrot.lane.b32.xlu0 %v442, 24
    %v467 = vpop.permute.xlu0 %466
    %468 = vrot.lane.b32.xlu0 %v445, 24
    %v469 = vpop.permute.xlu0 %468
    %v472 = vsel %vm189, %v418, %v451
    %v473 = vsel %vm189, %v421, %v453
    %vm474 = vcmask 130048
    %v475 = vsel %vm474, %v472, %v459
    %v476 = vsel %vm474, %v473, %v461
    %vm477 = vcmask 195584
    %v478 = vsel %vm477, %v475, %v467
    %v479 = vsel %vm477, %v476, %v469
    %v480 = vpack.c.bf16 %v479, %v478
    %v481 = vld [vmem:[%s6] sm:$0xf]
    %v482 = vld [vmem:[%s6 + $0x4] sm:$0xf]
    %v483 = vld [vmem:[%s6 + $0x8] sm:$0xf]
    %v484 = vld [vmem:[%s6 + $0xc] sm:$0xf]
    %v489 = vunpack.c.l.b16 %v481
    %v490 = vunpack.c.l.b16 %v482
    %v491 = vunpack.c.l.b16 %v483
    %v492 = vunpack.c.l.b16 %v484
    %v493 = vpack.c.b16 %v490, %v489
    %v494 = vpack.c.b16 %v492, %v491
    %v498 = vsel %vm38, %v480, 0
    %500 = vmatprep.subr.bf16.mxu0 0
    %501 = vmatpush1.bf16.msra.mxu0 %v493
    %502 = vmatprep.subr.bf16.mxu0 0
    %503 = vmatpush1.bf16.msra.mxu0 %v494
    %504 = vmatprep.subr.bf16.mxu0 0
    %505 = vmatpush1.bf16.msra.mxu0 0
    %506 = vmatprep.subr.bf16.mxu0 0
    %507 = vmatpush1.bf16.msra.mxu0 0
    %508 = vmatprep.subr.bf16.mxu0 0
    %509 = vmatpush1.bf16.msra.mxu0 0
    %510 = vmatprep.subr.bf16.mxu0 0
    %511 = vmatpush1.bf16.msra.mxu0 0
    %512 = vmatprep.subr.bf16.mxu0 0
    %513 = vmatpush1.bf16.msra.mxu0 0
    %514 = vmatprep.subr.bf16.mxu0 0
    %515 = vmatpush1.bf16.msra.mxu0 0
    %516 = vmatprep.subr.bf16.mxu0 0
    %517 = vmatpush1.bf16.msra.mxu0 0
    %518 = vmatprep.subr.bf16.mxu0 0
    %519 = vmatpush1.bf16.msra.mxu0 0
    %520 = vmatprep.subr.bf16.mxu0 0
    %521 = vmatpush1.bf16.msra.mxu0 0
    %522 = vmatprep.subr.bf16.mxu0 0
    %523 = vmatpush1.bf16.msra.mxu0 0
    %524 = vmatprep.subr.bf16.mxu0 0
    %525 = vmatpush1.bf16.msra.mxu0 0
    %526 = vmatprep.subr.bf16.mxu0 0
    %527 = vmatpush1.bf16.msra.mxu0 0
    %528 = vmatprep.subr.bf16.mxu0 0
    %529 = vmatpush1.bf16.msra.mxu0 0
    %530 = vmatprep.subr.bf16.mxu0 0
    %531 = vmatpush1.bf16.msra.mxu0 0
    %532 = vmatprep.mubr.bf16.mxu0 0
    %533 = vmatmul.mubr.bf16.gmra.mrb[0].mxu0 %v498
    %v534 = vpop.f32.mrb[0].mxu0
    %v535 = vadd.f32 0.0, %v534
    %v536 = vpop.f32.mrb[0].mxu0
    %v537 = vpop.f32.mrb[0].mxu0
    %v538 = vadd.f32 0.0, %v537
    %v539 = vpop.f32.mrb[0].mxu0
    %540 = vdwg.mxu0
    %v541 = vadd.f32 %v34, %v535
    %v542 = vadd.f32 %v35, %v538
    %v543 = vmul.f32 %v541, %v541
    %v544 = vmul.f32 %v542, %v542
    %v545 = vsel %vm38, %v543, 0.0
    %546 = vadd.xlane.f32.xlu0 %v545
    %v547 = vpop.xlane.xlu0 %546
    %v548 = vsel %vm38, %v544, 0.0
    %549 = vadd.xlane.f32.xlu0 %v548
    %v550 = vpop.xlane.xlu0 %549
    %v551 = vld [vmem:[%s4] sm:$0x1]
    %v552 = vrsqrt.pop %v547
    %v553 = vmul.f32 %v547, %v552
    %vm554 = vcmp.eq.f32.partialorder %v547, inf
    %v555 = vsel %vm554, %v547, %v553
    %vm556 = vcmp.eq.f32.partialorder %v547, 0.0
    %v557 = vand.u32 %v547, 2147483648
    %v558 = vsel %vm556, %v557, %v555
    %v559 = vrsqrt.pop %v550
    %v560 = vmul.f32 %v550, %v559
    %vm561 = vcmp.eq.f32.partialorder %v550, inf
    %v562 = vsel %vm561, %v550, %v560
    %vm563 = vcmp.eq.f32.partialorder %v550, 0.0
    %v564 = vand.u32 %v550, 2147483648
    %v565 = vsel %vm563, %v564, %v562
    %v566 = vmul.f32 %v558, 0.17677669
    %v567 = vmul.f32 %v565, 0.17677669
    %v568 = vadd.f32 %v566, 1e-05
    %v569 = vadd.f32 %v567, 1e-05
    %v571 = vlaneseq
    %v572 = vshrl.u32 %v571, 7
    %v573 = vsub.s32 0, %v572
    %v574 = vrot.slane %v551, %v573
    %v576 = vrcp.pop %v568
    %v577 = vmul.f32 %v574, %v576
    %v578 = vrcp.pop %v569
    %v579 = vmul.f32 %v574, %v578
    %v580 = vmul.f32 %v541, %v577
    %v581 = vmul.f32 %v542, %v579
    %v582 = vpack.c.bf16 %v581, %v580
    %v583 = vld [vmem:[%s7] sm:$0xf]
    %v584 = vld [vmem:[%s7 + $0x4] sm:$0xf]
    %v585 = vld [vmem:[%s7 + $0x8] sm:$0xf]
    %v586 = vld [vmem:[%s7 + $0xc] sm:$0xf]
    %v591 = vunpack.c.l.b16 %v583
    %v592 = vunpack.c.l.b16 %v584
    %v593 = vunpack.c.l.b16 %v585
    %v594 = vunpack.c.l.b16 %v586
    %v595 = vpack.c.b16 %v592, %v591
    %v596 = vpack.c.b16 %v594, %v593
    %v600 = vsel %vm38, %v582, 0
    %602 = vmatprep.subr.bf16.mxu0 0
    %603 = vmatpush1.bf16.msra.mxu0 %v595
    %604 = vmatprep.subr.bf16.mxu0 0
    %605 = vmatpush1.bf16.msra.mxu0 %v596
    %606 = vmatprep.subr.bf16.mxu0 0
    %607 = vmatpush1.bf16.msra.mxu0 0
    %608 = vmatprep.subr.bf16.mxu0 0
    %609 = vmatpush1.bf16.msra.mxu0 0
    %610 = vmatprep.subr.bf16.mxu0 0
    %611 = vmatpush1.bf16.msra.mxu0 0
    %612 = vmatprep.subr.bf16.mxu0 0
    %613 = vmatpush1.bf16.msra.mxu0 0
    %614 = vmatprep.subr.bf16.mxu0 0
    %615 = vmatpush1.bf16.msra.mxu0 0
    %616 = vmatprep.subr.bf16.mxu0 0
    %617 = vmatpush1.bf16.msra.mxu0 0
    %618 = vmatprep.subr.bf16.mxu0 0
    %619 = vmatpush1.bf16.msra.mxu0 0
    %620 = vmatprep.subr.bf16.mxu0 0
    %621 = vmatpush1.bf16.msra.mxu0 0
    %622 = vmatprep.subr.bf16.mxu0 0
    %623 = vmatpush1.bf16.msra.mxu0 0
    %624 = vmatprep.subr.bf16.mxu0 0
    %625 = vmatpush1.bf16.msra.mxu0 0
    %626 = vmatprep.subr.bf16.mxu0 0
    %627 = vmatpush1.bf16.msra.mxu0 0
    %628 = vmatprep.subr.bf16.mxu0 0
    %629 = vmatpush1.bf16.msra.mxu0 0
    %630 = vmatprep.subr.bf16.mxu0 0
    %631 = vmatpush1.bf16.msra.mxu0 0
    %632 = vmatprep.subr.bf16.mxu0 0
    %633 = vmatpush1.bf16.msra.mxu0 0
    %634 = vmatprep.mubr.bf16.mxu0 0
    %635 = vmatmul.mubr.bf16.gmra.mrb[0].mxu0 %v600
    %v636 = vpop.f32.mrb[0].mxu0
    %v637 = vadd.f32 0.0, %v636
    %v638 = vpop.f32.mrb[0].mxu0
    %v639 = vpop.f32.mrb[0].mxu0
    %v640 = vadd.f32 0.0, %v639
    %v641 = vpop.f32.mrb[0].mxu0
    %642 = vdwg.mxu0
    %v643 = vmul.f32 %v637, 0.5
    %v644 = vmul.f32 %v640, 0.5
    %v645 = vtanh.pop %v643
    %v646 = vtanh.pop %v644
    %v647 = vadd.f32 %v645, 1.0
    %v648 = vadd.f32 %v646, 1.0
    %v649 = vmul.f32 %v647, 0.5
    %v650 = vmul.f32 %v648, 0.5
    %v651 = vmul.f32 %v637, %v649
    %v652 = vmul.f32 %v640, %v650
    %655 = vrot.lane.b32.xlu0 %v637, 64
    %v656 = vpop.permute.xlu0 %655
    %657 = vrot.lane.b32.xlu0 %v640, 64
    %v658 = vpop.permute.xlu0 %657
    %v661 = vmul.f32 %v651, %v656
    %v662 = vmul.f32 %v652, %v658
    %v663 = vpack.c.bf16 %v662, %v661
    %v664 = vld [vmem:[%s8] sm:$0xf]
    %v665 = vld [vmem:[%s8 + $0x4] sm:$0xf]
    %v666 = vld [vmem:[%s8 + $0x8] sm:$0xf]
    %v667 = vld [vmem:[%s8 + $0xc] sm:$0xf]
    %v668 = vld [vmem:[%s8 + $0x10] sm:$0xf]
    %v669 = vld [vmem:[%s8 + $0x14] sm:$0xf]
    %v670 = vld [vmem:[%s8 + $0x18] sm:$0xf]
    %v671 = vld [vmem:[%s8 + $0x1c] sm:$0xf]
    %v680 = vunpack.c.l.b16 %v664
    %v681 = vunpack.c.l.b16 %v665
    %v682 = vunpack.c.l.b16 %v666
    %v683 = vunpack.c.l.b16 %v667
    %v684 = vunpack.c.l.b16 %v668
    %v685 = vunpack.c.l.b16 %v669
    %v686 = vunpack.c.l.b16 %v670
    %v687 = vunpack.c.l.b16 %v671
    %v688 = vpack.c.b16 %v681, %v680
    %v689 = vpack.c.b16 %v683, %v682
    %v690 = vpack.c.b16 %v685, %v684
    %v691 = vpack.c.b16 %v687, %v686
    %vm696 = vcmask 523264
    %v698 = vsel %vm696, %v663, 0
    %700 = vmatprep.subr.bf16.mxu0 0
    %701 = vmatpush1.bf16.msra.mxu0 %v688
    %702 = vmatprep.subr.bf16.mxu0 0
    %703 = vmatpush1.bf16.msra.mxu0 %v689
    %704 = vmatprep.subr.bf16.mxu0 0
    %705 = vmatpush1.bf16.msra.mxu0 %v690
    %706 = vmatprep.subr.bf16.mxu0 0
    %707 = vmatpush1.bf16.msra.mxu0 %v691
    %708 = vmatprep.subr.bf16.mxu0 0
    %709 = vmatpush1.bf16.msra.mxu0 0
    %710 = vmatprep.subr.bf16.mxu0 0
    %711 = vmatpush1.bf16.msra.mxu0 0
    %712 = vmatprep.subr.bf16.mxu0 0
    %713 = vmatpush1.bf16.msra.mxu0 0
    %714 = vmatprep.subr.bf16.mxu0 0
    %715 = vmatpush1.bf16.msra.mxu0 0
    %716 = vmatprep.subr.bf16.mxu0 0
    %717 = vmatpush1.bf16.msra.mxu0 0
    %718 = vmatprep.subr.bf16.mxu0 0
    %719 = vmatpush1.bf16.msra.mxu0 0
    %720 = vmatprep.subr.bf16.mxu0 0
    %721 = vmatpush1.bf16.msra.mxu0 0
    %722 = vmatprep.subr.bf16.mxu0 0
    %723 = vmatpush1.bf16.msra.mxu0 0
    %724 = vmatprep.subr.bf16.mxu0 0
    %725 = vmatpush1.bf16.msra.mxu0 0
    %726 = vmatprep.subr.bf16.mxu0 0
    %727 = vmatpush1.bf16.msra.mxu0 0
    %728 = vmatprep.subr.bf16.mxu0 0
    %729 = vmatpush1.bf16.msra.mxu0 0
    %730 = vmatprep.subr.bf16.mxu0 0
    %731 = vmatpush1.bf16.msra.mxu0 0
    %732 = vmatprep.mubr.bf16.mxu0 0
    %733 = vmatmul.mubr.bf16.gmra.mrb[0].mxu0 %v698
    %v734 = vpop.f32.mrb[0].mxu0
    %v735 = vadd.f32 0.0, %v734
    %v736 = vpop.f32.mrb[0].mxu0
    %v737 = vpop.f32.mrb[0].mxu0
    %v738 = vadd.f32 0.0, %v737
    %v739 = vpop.f32.mrb[0].mxu0
    %740 = vdwg.mxu0
    %v741 = vadd.f32 %v541, %v735
    %v742 = vadd.f32 %v542, %v738
    %743 = vst.msk [vmem:[#allocation2] sm:$0xff] %vm38, %v741
    %744 = vst.msk [vmem:[#allocation2 + $0x8] sm:$0xff] %vm38, %v742
    // Predicated region
    $region38: #{llama2_block.1} parent=1 // pred_check
      _
    $region39: #{llama2_block.1} parent=1 // pred_check_branch
      %746 = sbr.rel (0) target = $region41
    $region40: #{llama2_block.1} parent=1 // pred_region
      %s748 = ssub.s32 256, 256
      %749 = vsyncadd [#allocation3], %s748
      %s750 = sshll.u32 [#allocation2], 4
      %s751 = int_to_ptr.vmem [resolvable:$true] %s750
      %756 = dma.vmem_to_hbm [thread:$0]  %s751, 256, %s9, [#allocation3], 128, 128, 8
    $region41: #{llama2_block.1} parent=1 // pred_fallthru
      _
    // Predicated region
    $region42: #{llama2_block.1} parent=1 // pred_check
      _
    $region43: #{llama2_block.1} parent=1 // pred_check_branch
      %758 = sbr.rel (0) target = $region45
    $region44: #{llama2_block.1} parent=1 // pred_region
      %759 = dma.done [#allocation3], 256
    $region45: #{llama2_block.1} parent=1 // pred_fallthru
      _
    %760 = vsyncpa [#allocation3], 1

</llo_original>
